<compile_context>
chip_gen: v7x
topology: tpu7x:2x2x1
jax: 0.10.0
libtpu: 0.0.40
codegen_flags: <defaults>
</compile_context>

<pallas_src>
import functools

import jax
import jax.numpy as jnp
from jax import lax
from jax.experimental import pallas as pl
from jax.experimental.pallas import tpu as pltpu


def resiblock_kernel(x_ref, wt_ref, shift_ref, o_ref, *, compute_dtype):
    """One (TILE_N, H) row tile pushed through all U res-units.

    x_ref     : (TILE_N, H)  input rows (one tile of the batch axis)
    wt_ref    : (U, H, H)    folded, pre-transposed weights (resident: constant index_map)
    shift_ref : (U, H)       folded bias + BN shift, f32 (resident)
    o_ref     : (TILE_N, H)  output = x + res_units(x)
    """
    n_units = wt_ref.shape[0]

    # Carry the activation in the MXU input dtype (bf16) to halve the carried vreg footprint.
    h = x_ref[...].astype(compute_dtype)
    for u in range(n_units):  # U is small & static -> fully unrolled, static ref indexing
        # Linear + folded BatchNorm: bf16 x bf16 on the MXU, f32 accumulate.
        z = jnp.dot(h, wt_ref[u], preferred_element_type=jnp.float32)
        # Shift add + ReLU in f32 (native VPU path on all generations).
        # Dropout is identity in eval mode.
        # TODO(synk): training-mode Dropout / batch-stat BatchNorm (pltpu.prng_*) intentionally omitted.
        z = jnp.maximum(z + shift_ref[pl.ds(u, 1), :], 0.0)
        # Re-cast to bf16 for the next matmul; keep the final unit's output in f32.
        h = z.astype(compute_dtype) if u + 1 < n_units else z

    # Residual add in f32; x is re-read from VMEM here so it is not live across the unit loop.
    o_ref[...] = (x_ref[...].astype(jnp.float32) + h).astype(o_ref.dtype)


def fold_params(w, b, gamma, beta, running_mean, running_var, eps=1e-5,
                weight_dtype=jnp.bfloat16):
    """Fold eval-mode BatchNorm1d into the Linear params (algebraically exact in f32)."""
    scale = gamma * lax.rsqrt(running_var + eps)               # (U, H) per out-feature
    shift = beta - running_mean * scale                        # (U, H)
    # Scale out-feature rows, transpose to (in, out) so the kernel does h @ Wt, cast to bf16.
    wt_folded = jnp.transpose(w * scale[:, :, None], (0, 2, 1)).astype(weight_dtype)
    shift_folded = (b * scale + shift).astype(jnp.float32)     # (U, H), lane-dense
    return wt_folded, shift_folded


def _choose_tile_n(n):
    """>=256-row tiles for deployment-scale batches (MXU occupancy); one full tile for tiny N."""
    if n >= 256:
        return 256
    return max(8, ((n + 7) // 8) * 8)   # (8,128) sublane constraint


def resiblock_forward(x, w, b, gamma, beta, running_mean, running_var, eps=1e-5,
                      weight_dtype=jnp.bfloat16):
    """x: (N, H); w: (U, H, H) torch layout (out, in); b/gamma/beta/mean/var: (U, H)."""
    N, H = x.shape
    U = w.shape[0]
    wt_folded, shift_folded = fold_params(w, b, gamma, beta, running_mean, running_var,
                                          eps=eps, weight_dtype=weight_dtype)

    tile_n = _choose_tile_n(N)
    n_pad = (-N) % tile_n
    x_p = jnp.pad(x, ((0, n_pad), (0, 0))) if n_pad else x
    n_rows = N + n_pad
    grid = (n_rows // tile_n,)

    cost = pl.CostEstimate(
        flops=2 * U * n_rows * H * H,
        transcendentals=0,
        bytes_accessed=(n_rows * H * x.dtype.itemsize * 2            # x in + out
                        + wt_folded.size * wt_folded.dtype.itemsize  # weights (once)
                        + shift_folded.size * 4),                    # shifts (once)
    )

    out = pl.pallas_call(
        functools.partial(resiblock_kernel, compute_dtype=weight_dtype),
        out_shape=jax.ShapeDtypeStruct((n_rows, H), x.dtype),
        grid_spec=pltpu.PrefetchScalarGridSpec(
            num_scalar_prefetch=0,
            grid=grid,
            in_specs=[
                pl.BlockSpec((tile_n, H), lambda i: (i, 0)),      # x row tiles (double-buffered)
                pl.BlockSpec((U, H, H), lambda i: (0, 0, 0)),     # weights: DMA'd once, resident
                pl.BlockSpec((U, H), lambda i: (0, 0)),           # shifts: resident
            ],
            out_specs=pl.BlockSpec((tile_n, H), lambda i: (i, 0)),
        ),
        compiler_params=pltpu.CompilerParams(
            # Batch tiles are independent -> megacore sharding on v7x (2 TC/chip).
            dimension_semantics=("parallel",),
        ),
        cost_estimate=cost,
    )(x_p, wt_folded, shift_folded)

    return out[:N] if n_pad else out


# ----------------------------- references -----------------------------------

def resiblock_reference(x, w, b, gamma, beta, running_mean, running_var, eps=1e-5):
    """Pure-JAX f32 eval-mode reference mirroring the PyTorch forward exactly."""
    identity = x
    h = x
    for u in range(w.shape[0]):
        z = h @ w[u].T + b[u]
        z = (z - running_mean[u]) / jnp.sqrt(running_var[u] + eps) * gamma[u] + beta[u]
        h = jnp.maximum(z, 0.0)   # Dropout: identity in eval mode
    return identity + h


def resiblock_folded_reference(x, wt_folded, shift_folded):
    """Reference mirroring the kernel's exact numerics (bf16 carry, f32 accumulate)."""
    U = wt_folded.shape[0]
    h = x.astype(wt_folded.dtype)
    for u in range(U):
        z = jnp.dot(h.astype(jnp.float32), wt_folded[u].astype(jnp.float32)) + shift_folded[u]
        z = jnp.maximum(z, 0.0)
        h = z.astype(wt_folded.dtype) if u + 1 < U else z
    return (x.astype(jnp.float32) + h.astype(jnp.float32)).astype(x.dtype)


# --------------------------------- demo --------------------------------------

if __name__ == "__main__":
    # Module hyperparameters (synthetic, deterministic init).
    n_resUnits = 3
    hidden_layer = 128
    dropout = 0.1  # unused in eval-mode forward
    batch = 8

    key = jax.random.PRNGKey(0)
    kx, kw, kb, kg, kbe, km, kv, kx2 = jax.random.split(key, 8)

    x = jax.random.normal(kx, (batch, hidden_layer), dtype=jnp.float32)

    # Linear params (torch layout: weight (out_features, in_features)).
    w = jax.random.normal(kw, (n_resUnits, hidden_layer, hidden_layer), dtype=jnp.float32)
    w = w * (1.0 / jnp.sqrt(hidden_layer))  # keep activations well-scaled
    b = 0.01 * jax.random.normal(kb, (n_resUnits, hidden_layer), dtype=jnp.float32)

    # BatchNorm1d params + running stats (eval mode).
    gamma = 1.0 + 0.05 * jax.random.normal(kg, (n_resUnits, hidden_layer), dtype=jnp.float32)
    beta = 0.05 * jax.random.normal(kbe, (n_resUnits, hidden_layer), dtype=jnp.float32)
    running_mean = 0.1 * jax.random.normal(km, (n_resUnits, hidden_layer), dtype=jnp.float32)
    running_var = 1.0 + 0.1 * jnp.abs(
        jax.random.normal(kv, (n_resUnits, hidden_layer), dtype=jnp.float32))

    # --- small-batch path (single tile, grid=(1,)) ---
    out = resiblock_forward(x, w, b, gamma, beta, running_mean, running_var)
    out = jax.block_until_ready(out)
    assert out.shape == (batch, hidden_layer)

    wt_f, sh_f = fold_params(w, b, gamma, beta, running_mean, running_var)

    # 1) Kernel-logic check against a reference using identical folded/cast params (tight).
    ref_folded = resiblock_folded_reference(x, wt_f, sh_f)
    assert jnp.allclose(out, ref_folded, atol=2e-3, rtol=2e-3), "kernel mismatch vs folded reference"

    # 2) End-to-end semantics check vs exact f32 PyTorch-style reference (bf16 tolerance).
    ref = resiblock_reference(x, w, b, gamma, beta, running_mean, running_var)
    assert jnp.allclose(out, ref, atol=1e-1, rtol=1e-1), "mismatch vs pure-JAX f32 reference"

    # --- multi-tile path (exercises batch grid, row padding, resident-weight index_map) ---
    big_batch = 300   # pads to 512 rows -> 2 grid steps of 256
    x_big = jax.random.normal(kx2, (big_batch, hidden_layer), dtype=jnp.float32)
    out_big = resiblock_forward(x_big, w, b, gamma, beta, running_mean, running_var)
    out_big = jax.block_until_ready(out_big)
    assert out_big.shape == (big_batch, hidden_layer)
    ref_big = resiblock_folded_reference(x_big, wt_f, sh_f)
    assert jnp.allclose(out_big, ref_big, atol=2e-3, rtol=2e-3), "tiled kernel mismatch vs folded reference"
    ref_big_f32 = resiblock_reference(x_big, w, b, gamma, beta, running_mean, running_var)
    assert jnp.allclose(out_big, ref_big_f32, atol=1e-1, rtol=1e-1), "tiled mismatch vs f32 reference"

    print("KERNEL_OK")
</pallas_src>

<mosaic_0001>
module attributes {stable_mosaic.version = 11 : i64} {
  func.func @resiblock_kernel(%arg0: i32, %arg1: memref<8x128xf32, #tpu.memory_space<vmem>>, %arg2: memref<3x128x128xbf16, #tpu.memory_space<vmem>>, %arg3: memref<3x128xf32, #tpu.memory_space<vmem>>, %arg4: memref<8x128xf32, #tpu.memory_space<vmem>>) attributes {dimension_semantics = [#tpu.dimension_semantics<parallel>], iteration_bounds = array<i64: 1>, scalar_prefetch = 0 : i64, scratch_operands = 0 : i64, tpu.core_type = #tpu.core_type<tc>, window_params = [{transform_indices = @transform_0, window_bounds = array<i64: 8, 128>}, {pipeline_mode = #tpu.pipeline_mode<synchronous>, transform_indices = @transform_1, window_bounds = array<i64: 3, 128, 128>}, {pipeline_mode = #tpu.pipeline_mode<synchronous>, transform_indices = @transform_2, window_bounds = array<i64: 3, 128>}, {transform_indices = @transform_3, window_bounds = array<i64: 8, 128>}]} {
    %c0 = arith.constant 0 : index
    %c0_0 = arith.constant 0 : index
    %0 = vector.load %arg1[%c0, %c0_0] : memref<8x128xf32, #tpu.memory_space<vmem>>, vector<8x128xf32>
    %1 = arith.truncf %0 : vector<8x128xf32> to vector<8x128xbf16>
    %c0_1 = arith.constant 0 : index
    %c0_2 = arith.constant 0 : index
    %c0_3 = arith.constant 0 : index
    %2 = vector.load %arg2[%c0_1, %c0_2, %c0_3] : memref<3x128x128xbf16, #tpu.memory_space<vmem>>, vector<1x128x128xbf16>
    %3 = vector.shape_cast %2 : vector<1x128x128xbf16> to vector<128x128xbf16>
    %cst = arith.constant dense<0.000000e+00> : vector<8x128xf32>
    %4 = tpu.matmul %1, %3, %cst {dimension_numbers = #tpu.dot_dimension_numbers<[1], [0], [0], [1], [0, 0, 1, 1], [], []>} : vector<8x128xbf16>, vector<128x128xbf16>, vector<8x128xf32> -> vector<8x128xf32>
    %c0_4 = arith.constant 0 : index
    %c0_5 = arith.constant 0 : index
    %5 = vector.load %arg3[%c0_4, %c0_5] : memref<3x128xf32, #tpu.memory_space<vmem>>, vector<1x128xf32>
    %6 = vector.broadcast %5 : vector<1x128xf32> to vector<8x128xf32>
    %7 = arith.addf %4, %6 : vector<8x128xf32>
    %cst_6 = arith.constant 0.000000e+00 : f32
    %8 = vector.broadcast %cst_6 : f32 to vector<8x128xf32>
    %9 = arith.maximumf %7, %8 : vector<8x128xf32>
    %10 = arith.truncf %9 : vector<8x128xf32> to vector<8x128xbf16>
    %c1 = arith.constant 1 : index
    %c0_7 = arith.constant 0 : index
    %c0_8 = arith.constant 0 : index
    %11 = vector.load %arg2[%c1, %c0_7, %c0_8] : memref<3x128x128xbf16, #tpu.memory_space<vmem>>, vector<1x128x128xbf16>
    %12 = vector.shape_cast %11 : vector<1x128x128xbf16> to vector<128x128xbf16>
    %cst_9 = arith.constant dense<0.000000e+00> : vector<8x128xf32>
    %13 = tpu.matmul %10, %12, %cst_9 {dimension_numbers = #tpu.dot_dimension_numbers<[1], [0], [0], [1], [0, 0, 1, 1], [], []>} : vector<8x128xbf16>, vector<128x128xbf16>, vector<8x128xf32> -> vector<8x128xf32>
    %c1_10 = arith.constant 1 : index
    %c0_11 = arith.constant 0 : index
    %14 = vector.load %arg3[%c1_10, %c0_11] : memref<3x128xf32, #tpu.memory_space<vmem>>, vector<1x128xf32>
    %15 = vector.broadcast %14 : vector<1x128xf32> to vector<8x128xf32>
    %16 = arith.addf %13, %15 : vector<8x128xf32>
    %cst_12 = arith.constant 0.000000e+00 : f32
    %17 = vector.broadcast %cst_12 : f32 to vector<8x128xf32>
    %18 = arith.maximumf %16, %17 : vector<8x128xf32>
    %19 = arith.truncf %18 : vector<8x128xf32> to vector<8x128xbf16>
    %c2 = arith.constant 2 : index
    %c0_13 = arith.constant 0 : index
    %c0_14 = arith.constant 0 : index
    %20 = vector.load %arg2[%c2, %c0_13, %c0_14] : memref<3x128x128xbf16, #tpu.memory_space<vmem>>, vector<1x128x128xbf16>
    %21 = vector.shape_cast %20 : vector<1x128x128xbf16> to vector<128x128xbf16>
    %cst_15 = arith.constant dense<0.000000e+00> : vector<8x128xf32>
    %22 = tpu.matmul %19, %21, %cst_15 {dimension_numbers = #tpu.dot_dimension_numbers<[1], [0], [0], [1], [0, 0, 1, 1], [], []>} : vector<8x128xbf16>, vector<128x128xbf16>, vector<8x128xf32> -> vector<8x128xf32>
    %c2_16 = arith.constant 2 : index
    %c0_17 = arith.constant 0 : index
    %23 = vector.load %arg3[%c2_16, %c0_17] : memref<3x128xf32, #tpu.memory_space<vmem>>, vector<1x128xf32>
    %24 = vector.broadcast %23 : vector<1x128xf32> to vector<8x128xf32>
    %25 = arith.addf %22, %24 : vector<8x128xf32>
    %cst_18 = arith.constant 0.000000e+00 : f32
    %26 = vector.broadcast %cst_18 : f32 to vector<8x128xf32>
    %27 = arith.maximumf %25, %26 : vector<8x128xf32>
    %c0_19 = arith.constant 0 : index
    %c0_20 = arith.constant 0 : index
    %28 = vector.load %arg1[%c0_19, %c0_20] : memref<8x128xf32, #tpu.memory_space<vmem>>, vector<8x128xf32>
    %29 = arith.addf %28, %27 : vector<8x128xf32>
    %c0_21 = arith.constant 0 : index
    %c0_22 = arith.constant 0 : index
    %30 = vector.load %arg4[%c0_21, %c0_22] : memref<8x128xf32, #tpu.memory_space<vmem>>, vector<8x128xf32>
    tpu.vector_store %arg4[%c0_21, %c0_22], %29 {strides = array<i32>} : memref<8x128xf32, #tpu.memory_space<vmem>>, vector<8x128xf32>,
    return
  }
  func.func @transform_0(%arg0: i32) -> (i32, i32) {
    %c0_i32 = arith.constant 0 : i32
    %c0_i32_0 = arith.constant 0 : i32
    return %arg0, %c0_i32 : i32, i32
  }
  func.func @transform_1(%arg0: i32) -> (i32, i32, i32) {
    %c0_i32 = arith.constant 0 : i32
    %c0_i32_0 = arith.constant 0 : i32
    %c0_i32_1 = arith.constant 0 : i32
    %c0_i32_2 = arith.constant 0 : i32
    return %c0_i32, %c0_i32_0, %c0_i32_1 : i32, i32, i32
  }
  func.func @transform_2(%arg0: i32) -> (i32, i32) {
    %c0_i32 = arith.constant 0 : i32
    %c0_i32_0 = arith.constant 0 : i32
    %c0_i32_1 = arith.constant 0 : i32
    return %c0_i32, %c0_i32_0 : i32, i32
  }
  func.func @transform_3(%arg0: i32) -> (i32, i32) {
    %c0_i32 = arith.constant 0 : i32
    %c0_i32_0 = arith.constant 0 : i32
    return %arg0, %c0_i32 : i32, i32
  }
}

</mosaic_0001>

<llo_original>
// kernel: tpu_custom_call.1
$region0: #{tpu_custom_call.1}
  #allocation0 [shape = 'u32[]', space=smem, size = 0x4, offset = 0x4, fixed_abs, tag = 'smem constant byte address 0x4 - core index']
  #allocation1 [shape = 'u32[144,128]{1,0:T(1,128)}', space=vmem, size = 0x12000, scoped, tag = 'internal scratch']
  %s0 = inlined_call_operand.hbm [shape: f32[8,128], index: 0, kind: input, shape index: {}]
  %s1 = inlined_call_operand.hbm [shape: bf16[3,128,128], index: 1, kind: input, shape index: {}]
  %s2 = inlined_call_operand.vmem [shape: f32[3,128], index: 2, kind: input, shape index: {}]
  %s3 = inlined_call_operand.hbm [shape: f32[8,128], index: 3, kind: output, shape index: {}]
  %s4 = sld [smem:[#allocation0]]
  $region30: #{tpu_custom_call.1} parent=0
    _
  %s6 = ssub.s32 1, %s4
  %s7 = scalar_select 0, %s6, %s4
  $region1: #{tpu_custom_call.1} parent=0
    #allocation2 [shape = 'u8[4096]{0}', space=vmem, size = 0x1000, scoped, tag = 'input window, operand 0, single buffered']
    #allocation3 [shape = 's32[1]{0}', space=sflag, size = 0x4, scoped, tag = 'scoped memory for tpu_custom_call.1']
    #allocation4 [shape = 's32[1]{0}', space=sflag, size = 0x4, scoped, tag = 'scoped memory for tpu_custom_call.1']
    #allocation5 [shape = 'u8[98304]{0}', space=vmem, size = 0x18000, scoped, tag = 'input window, operand 1, single buffered']
    #allocation6 [shape = 's32[1]{0}', space=sflag, size = 0x4, scoped, tag = 'scoped memory for tpu_custom_call.1']
    #allocation7 [shape = 'u8[4096]{0}', space=vmem, size = 0x1000, scoped, tag = 'output window, operand 0, single buffered']
    %8 = vsyncpa [#allocation3], 0
    %9 = vsyncpa [#allocation6], 0
    %10 = vsyncpa [#allocation4], 0
    // Predicated region
    $region2: #{tpu_custom_call.1} parent=1 // pred_check
      _
    $region3: #{tpu_custom_call.1} parent=1 // pred_check_branch
      %12 = sbr.rel (0) target = $region5
    $region4: #{tpu_custom_call.1} parent=1 // pred_region
      %s14 = ssub.s32 128, 128
      %15 = vsyncadd [#allocation3], %s14
      %s17 = sshll.u32 [#allocation2], 4
      %s18 = int_to_ptr.vmem [resolvable:$true] %s17
      %20 = dma.hbm_to_vmem [thread:$0]  %s0, 128, %s18, [#allocation3]
    $region5: #{tpu_custom_call.1} parent=1 // pred_fallthru
      _
    // Predicated region
    $region6: #{tpu_custom_call.1} parent=1 // pred_check
      _
    $region7: #{tpu_custom_call.1} parent=1 // pred_check_branch
      %22 = sbr.rel (0) target = $region9
    $region8: #{tpu_custom_call.1} parent=1 // pred_region
      %s24 = ssub.s32 3072, 3072
      %25 = vsyncadd [#allocation6], %s24
      %s26 = sshll.u32 [#allocation5], 4
      %s27 = int_to_ptr.vmem [resolvable:$true] %s26
      %32 = dma.hbm_to_vmem [thread:$0]  %s1, 3072, %s27, [#allocation6], 64, 64, 4
    $region9: #{tpu_custom_call.1} parent=1 // pred_fallthru
      _
    // Predicated region
    $region10: #{tpu_custom_call.1} parent=1 // pred_check
      _
    $region11: #{tpu_custom_call.1} parent=1 // pred_check_branch
      %34 = sbr.rel (0) target = $region13
    $region12: #{tpu_custom_call.1} parent=1 // pred_region
      _
    $region13: #{tpu_custom_call.1} parent=1 // pred_fallthru
      _
    // Predicated region
    $region14: #{tpu_custom_call.1} parent=1 // pred_check
      _
    $region15: #{tpu_custom_call.1} parent=1 // pred_check_branch
      %36 = sbr.rel (0) target = $region17
    $region16: #{tpu_custom_call.1} parent=1 // pred_region
      %37 = dma.done [#allocation3], 128
    $region17: #{tpu_custom_call.1} parent=1 // pred_fallthru
      _
    // Predicated region
    $region18: #{tpu_custom_call.1} parent=1 // pred_check
      _
    $region19: #{tpu_custom_call.1} parent=1 // pred_check_branch
      %39 = sbr.rel (0) target = $region21
    $region20: #{tpu_custom_call.1} parent=1 // pred_region
      %40 = dma.done [#allocation6], 3072
    $region21: #{tpu_custom_call.1} parent=1 // pred_fallthru
      _
    %v42 = vld [vmem:[#allocation2] sm:$0xff]
    %v43 = vpack.c.bf16 %v42, %v42
    %v44 = vld [vmem:[#allocation5] sm:$0xf]
    %v45 = vld [vmem:[#allocation5 + $0x4] sm:$0xf]
    %v46 = vld [vmem:[#allocation5 + $0x8] sm:$0xf]
    %v47 = vld [vmem:[#allocation5 + $0xc] sm:$0xf]
    %v48 = vld [vmem:[#allocation5 + $0x10] sm:$0xf]
    %v49 = vld [vmem:[#allocation5 + $0x14] sm:$0xf]
    %v50 = vld [vmem:[#allocation5 + $0x18] sm:$0xf]
    %v51 = vld [vmem:[#allocation5 + $0x1c] sm:$0xf]
    %v52 = vld [vmem:[#allocation5 + $0x20] sm:$0xf]
    %v53 = vld [vmem:[#allocation5 + $0x24] sm:$0xf]
    %v54 = vld [vmem:[#allocation5 + $0x28] sm:$0xf]
    %v55 = vld [vmem:[#allocation5 + $0x2c] sm:$0xf]
    %v56 = vld [vmem:[#allocation5 + $0x30] sm:$0xf]
    %v57 = vld [vmem:[#allocation5 + $0x34] sm:$0xf]
    %v58 = vld [vmem:[#allocation5 + $0x38] sm:$0xf]
    %v59 = vld [vmem:[#allocation5 + $0x3c] sm:$0xf]
    %v60 = vld [vmem:[%s2] sm:$0x1]
    %v61 = vlaneseq
    %v62 = vshrl.u32 %v61, 7
    %v63 = vsub.s32 0, %v62
    %v64 = vrot.slane %v60, %v63
    %v81 = vunpack.c.l.b16 %v44
    %v82 = vunpack.c.l.b16 %v45
    %v83 = vunpack.c.l.b16 %v46
    %v84 = vunpack.c.l.b16 %v47
    %v85 = vunpack.c.l.b16 %v48
    %v86 = vunpack.c.l.b16 %v49
    %v87 = vunpack.c.l.b16 %v50
    %v88 = vunpack.c.l.b16 %v51
    %v89 = vunpack.c.l.b16 %v52
    %v90 = vunpack.c.l.b16 %v53
    %v91 = vunpack.c.l.b16 %v54
    %v92 = vunpack.c.l.b16 %v55
    %v93 = vunpack.c.l.b16 %v56
    %v94 = vunpack.c.l.b16 %v57
    %v95 = vunpack.c.l.b16 %v58
    %v96 = vunpack.c.l.b16 %v59
    %v97 = vpack.c.b16 %v82, %v81
    %v98 = vpack.c.b16 %v84, %v83
    %v99 = vpack.c.b16 %v86, %v85
    %v100 = vpack.c.b16 %v88, %v87
    %v101 = vpack.c.b16 %v90, %v89
    %v102 = vpack.c.b16 %v92, %v91
    %v103 = vpack.c.b16 %v94, %v93
    %v104 = vpack.c.b16 %v96, %v95
    %113 = vmatprep.subr.bf16.mxu0 0
    %114 = vmatpush1.bf16.msra.mxu0 %v97
    %115 = vmatprep.subr.bf16.mxu0 0
    %116 = vmatpush1.bf16.msra.mxu0 %v98
    %117 = vmatprep.subr.bf16.mxu0 0
    %118 = vmatpush1.bf16.msra.mxu0 %v99
    %119 = vmatprep.subr.bf16.mxu0 0
    %120 = vmatpush1.bf16.msra.mxu0 %v100
    %121 = vmatprep.subr.bf16.mxu0 0
    %122 = vmatpush1.bf16.msra.mxu0 %v101
    %123 = vmatprep.subr.bf16.mxu0 0
    %124 = vmatpush1.bf16.msra.mxu0 %v102
    %125 = vmatprep.subr.bf16.mxu0 0
    %126 = vmatpush1.bf16.msra.mxu0 %v103
    %127 = vmatprep.subr.bf16.mxu0 0
    %128 = vmatpush1.bf16.msra.mxu0 %v104
    %129 = vmatprep.subr.bf16.mxu0 0
    %130 = vmatpush1.bf16.msra.mxu0 0
    %131 = vmatprep.subr.bf16.mxu0 0
    %132 = vmatpush1.bf16.msra.mxu0 0
    %133 = vmatprep.subr.bf16.mxu0 0
    %134 = vmatpush1.bf16.msra.mxu0 0
    %135 = vmatprep.subr.bf16.mxu0 0
    %136 = vmatpush1.bf16.msra.mxu0 0
    %137 = vmatprep.subr.bf16.mxu0 0
    %138 = vmatpush1.bf16.msra.mxu0 0
    %139 = vmatprep.subr.bf16.mxu0 0
    %140 = vmatpush1.bf16.msra.mxu0 0
    %141 = vmatprep.subr.bf16.mxu0 0
    %142 = vmatpush1.bf16.msra.mxu0 0
    %143 = vmatprep.subr.bf16.mxu0 0
    %144 = vmatpush1.bf16.msra.mxu0 0
    %145 = vmatprep.mubr.bf16.mxu0 0
    %146 = vmatmul.mubr.bf16.gmra.mrb[0].mxu0 %v43
    %v147 = vpop.f32.mrb[0].mxu0
    %v148 = vadd.f32 %v64, %v147
    %v149 = vpop.f32.mrb[0].mxu0
    %v150 = vpop.f32.mrb[0].mxu0
    %v151 = vpop.f32.mrb[0].mxu0
    %152 = vdwg.mxu0
    %v153 = vmax.f32 %v148, 0.0
    %v154 = vpack.c.bf16 %v153, %v153
    %s155 = scalar_lea.vmem [#allocation5], 64
    %v156 = vld [vmem:[%s155] sm:$0xf]
    %v157 = vld [vmem:[%s155 + $0x4] sm:$0xf]
    %v158 = vld [vmem:[%s155 + $0x8] sm:$0xf]
    %v159 = vld [vmem:[%s155 + $0xc] sm:$0xf]
    %v160 = vld [vmem:[%s155 + $0x10] sm:$0xf]
    %v161 = vld [vmem:[%s155 + $0x14] sm:$0xf]
    %v162 = vld [vmem:[%s155 + $0x18] sm:$0xf]
    %v163 = vld [vmem:[%s155 + $0x1c] sm:$0xf]
    %v164 = vld [vmem:[%s155 + $0x20] sm:$0xf]
    %v165 = vld [vmem:[%s155 + $0x24] sm:$0xf]
    %v166 = vld [vmem:[%s155 + $0x28] sm:$0xf]
    %v167 = vld [vmem:[%s155 + $0x2c] sm:$0xf]
    %v168 = vld [vmem:[%s155 + $0x30] sm:$0xf]
    %v169 = vld [vmem:[%s155 + $0x34] sm:$0xf]
    %v170 = vld [vmem:[%s155 + $0x38] sm:$0xf]
    %v171 = vld [vmem:[%s155 + $0x3c] sm:$0xf]
    %v172 = vld [vmem:[%s2 + $0x1] sm:$0x1]
    %v173 = vlaneseq
    %v174 = vshrl.u32 %v173, 7
    %v175 = vsub.s32 0, %v174
    %v176 = vrot.slane %v172, %v175
    %v193 = vunpack.c.l.b16 %v156
    %v194 = vunpack.c.l.b16 %v157
    %v195 = vunpack.c.l.b16 %v158
    %v196 = vunpack.c.l.b16 %v159
    %v197 = vunpack.c.l.b16 %v160
    %v198 = vunpack.c.l.b16 %v161
    %v199 = vunpack.c.l.b16 %v162
    %v200 = vunpack.c.l.b16 %v163
    %v201 = vunpack.c.l.b16 %v164
    %v202 = vunpack.c.l.b16 %v165
    %v203 = vunpack.c.l.b16 %v166
    %v204 = vunpack.c.l.b16 %v167
    %v205 = vunpack.c.l.b16 %v168
    %v206 = vunpack.c.l.b16 %v169
    %v207 = vunpack.c.l.b16 %v170
    %v208 = vunpack.c.l.b16 %v171
    %v209 = vpack.c.b16 %v194, %v193
    %v210 = vpack.c.b16 %v196, %v195
    %v211 = vpack.c.b16 %v198, %v197
    %v212 = vpack.c.b16 %v200, %v199
    %v213 = vpack.c.b16 %v202, %v201
    %v214 = vpack.c.b16 %v204, %v203
    %v215 = vpack.c.b16 %v206, %v205
    %v216 = vpack.c.b16 %v208, %v207
    %225 = vmatprep.subr.bf16.mxu0 0
    %226 = vmatpush1.bf16.msra.mxu0 %v209
    %227 = vmatprep.subr.bf16.mxu0 0
    %228 = vmatpush1.bf16.msra.mxu0 %v210
    %229 = vmatprep.subr.bf16.mxu0 0
    %230 = vmatpush1.bf16.msra.mxu0 %v211
    %231 = vmatprep.subr.bf16.mxu0 0
    %232 = vmatpush1.bf16.msra.mxu0 %v212
    %233 = vmatprep.subr.bf16.mxu0 0
    %234 = vmatpush1.bf16.msra.mxu0 %v213
    %235 = vmatprep.subr.bf16.mxu0 0
    %236 = vmatpush1.bf16.msra.mxu0 %v214
    %237 = vmatprep.subr.bf16.mxu0 0
    %238 = vmatpush1.bf16.msra.mxu0 %v215
    %239 = vmatprep.subr.bf16.mxu0 0
    %240 = vmatpush1.bf16.msra.mxu0 %v216
    %241 = vmatprep.subr.bf16.mxu0 0
    %242 = vmatpush1.bf16.msra.mxu0 0
    %243 = vmatprep.subr.bf16.mxu0 0
    %244 = vmatpush1.bf16.msra.mxu0 0
    %245 = vmatprep.subr.bf16.mxu0 0
    %246 = vmatpush1.bf16.msra.mxu0 0
    %247 = vmatprep.subr.bf16.mxu0 0
    %248 = vmatpush1.bf16.msra.mxu0 0
    %249 = vmatprep.subr.bf16.mxu0 0
    %250 = vmatpush1.bf16.msra.mxu0 0
    %251 = vmatprep.subr.bf16.mxu0 0
    %252 = vmatpush1.bf16.msra.mxu0 0
    %253 = vmatprep.subr.bf16.mxu0 0
    %254 = vmatpush1.bf16.msra.mxu0 0
    %255 = vmatprep.subr.bf16.mxu0 0
    %256 = vmatpush1.bf16.msra.mxu0 0
    %257 = vmatprep.mubr.bf16.mxu0 0
    %258 = vmatmul.mubr.bf16.gmra.mrb[0].mxu0 %v154
    %v259 = vpop.f32.mrb[0].mxu0
    %v260 = vadd.f32 %v176, %v259
    %v261 = vpop.f32.mrb[0].mxu0
    %v262 = vpop.f32.mrb[0].mxu0
    %v263 = vpop.f32.mrb[0].mxu0
    %264 = vdwg.mxu0
    %v265 = vmax.f32 %v260, 0.0
    %v266 = vpack.c.bf16 %v265, %v265
    %s267 = scalar_lea.vmem [#allocation5], 128
    %v268 = vld [vmem:[%s267] sm:$0xf]
    %v269 = vld [vmem:[%s267 + $0x4] sm:$0xf]
    %v270 = vld [vmem:[%s267 + $0x8] sm:$0xf]
    %v271 = vld [vmem:[%s267 + $0xc] sm:$0xf]
    %v272 = vld [vmem:[%s267 + $0x10] sm:$0xf]
    %v273 = vld [vmem:[%s267 + $0x14] sm:$0xf]
    %v274 = vld [vmem:[%s267 + $0x18] sm:$0xf]
    %v275 = vld [vmem:[%s267 + $0x1c] sm:$0xf]
    %v276 = vld [vmem:[%s267 + $0x20] sm:$0xf]
    %v277 = vld [vmem:[%s267 + $0x24] sm:$0xf]
    %v278 = vld [vmem:[%s267 + $0x28] sm:$0xf]
    %v279 = vld [vmem:[%s267 + $0x2c] sm:$0xf]
    %v280 = vld [vmem:[%s267 + $0x30] sm:$0xf]
    %v281 = vld [vmem:[%s267 + $0x34] sm:$0xf]
    %v282 = vld [vmem:[%s267 + $0x38] sm:$0xf]
    %v283 = vld [vmem:[%s267 + $0x3c] sm:$0xf]
    %v284 = vld [vmem:[%s2 + $0x2] sm:$0x1]
    %v285 = vlaneseq
    %v286 = vshrl.u32 %v285, 7
    %v287 = vsub.s32 0, %v286
    %v288 = vrot.slane %v284, %v287
    %v305 = vunpack.c.l.b16 %v268
    %v306 = vunpack.c.l.b16 %v269
    %v307 = vunpack.c.l.b16 %v270
    %v308 = vunpack.c.l.b16 %v271
    %v309 = vunpack.c.l.b16 %v272
    %v310 = vunpack.c.l.b16 %v273
    %v311 = vunpack.c.l.b16 %v274
    %v312 = vunpack.c.l.b16 %v275
    %v313 = vunpack.c.l.b16 %v276
    %v314 = vunpack.c.l.b16 %v277
    %v315 = vunpack.c.l.b16 %v278
    %v316 = vunpack.c.l.b16 %v279
    %v317 = vunpack.c.l.b16 %v280
    %v318 = vunpack.c.l.b16 %v281
    %v319 = vunpack.c.l.b16 %v282
    %v320 = vunpack.c.l.b16 %v283
    %v321 = vpack.c.b16 %v306, %v305
    %v322 = vpack.c.b16 %v308, %v307
    %v323 = vpack.c.b16 %v310, %v309
    %v324 = vpack.c.b16 %v312, %v311
    %v325 = vpack.c.b16 %v314, %v313
    %v326 = vpack.c.b16 %v316, %v315
    %v327 = vpack.c.b16 %v318, %v317
    %v328 = vpack.c.b16 %v320, %v319
    %337 = vmatprep.subr.bf16.mxu0 0
    %338 = vmatpush1.bf16.msra.mxu0 %v321
    %339 = vmatprep.subr.bf16.mxu0 0
    %340 = vmatpush1.bf16.msra.mxu0 %v322
    %341 = vmatprep.subr.bf16.mxu0 0
    %342 = vmatpush1.bf16.msra.mxu0 %v323
    %343 = vmatprep.subr.bf16.mxu0 0
    %344 = vmatpush1.bf16.msra.mxu0 %v324
    %345 = vmatprep.subr.bf16.mxu0 0
    %346 = vmatpush1.bf16.msra.mxu0 %v325
    %347 = vmatprep.subr.bf16.mxu0 0
    %348 = vmatpush1.bf16.msra.mxu0 %v326
    %349 = vmatprep.subr.bf16.mxu0 0
    %350 = vmatpush1.bf16.msra.mxu0 %v327
    %351 = vmatprep.subr.bf16.mxu0 0
    %352 = vmatpush1.bf16.msra.mxu0 %v328
    %353 = vmatprep.subr.bf16.mxu0 0
    %354 = vmatpush1.bf16.msra.mxu0 0
    %355 = vmatprep.subr.bf16.mxu0 0
    %356 = vmatpush1.bf16.msra.mxu0 0
    %357 = vmatprep.subr.bf16.mxu0 0
    %358 = vmatpush1.bf16.msra.mxu0 0
    %359 = vmatprep.subr.bf16.mxu0 0
    %360 = vmatpush1.bf16.msra.mxu0 0
    %361 = vmatprep.subr.bf16.mxu0 0
    %362 = vmatpush1.bf16.msra.mxu0 0
    %363 = vmatprep.subr.bf16.mxu0 0
    %364 = vmatpush1.bf16.msra.mxu0 0
    %365 = vmatprep.subr.bf16.mxu0 0
    %366 = vmatpush1.bf16.msra.mxu0 0
    %367 = vmatprep.subr.bf16.mxu0 0
    %368 = vmatpush1.bf16.msra.mxu0 0
    %369 = vmatprep.mubr.bf16.mxu0 0
    %370 = vmatmul.mubr.bf16.gmra.mrb[0].mxu0 %v266
    %v371 = vpop.f32.mrb[0].mxu0
    %v372 = vadd.f32 %v288, %v371
    %v373 = vpop.f32.mrb[0].mxu0
    %v374 = vpop.f32.mrb[0].mxu0
    %v375 = vpop.f32.mrb[0].mxu0
    %376 = vdwg.mxu0
    %v377 = vmax.f32 %v372, 0.0
    %v378 = vadd.f32 %v42, %v377
    %379 = vst [vmem:[#allocation7] sm:$0xff] %v378
    // Predicated region
    $region22: #{tpu_custom_call.1} parent=1 // pred_check
      _
    $region23: #{tpu_custom_call.1} parent=1 // pred_check_branch
      %381 = sbr.rel (0) target = $region25
    $region24: #{tpu_custom_call.1} parent=1 // pred_region
      %s383 = ssub.s32 128, 128
      %384 = vsyncadd [#allocation4], %s383
      %s386 = sshll.u32 [#allocation7], 4
      %s387 = int_to_ptr.vmem [resolvable:$true] %s386
      %389 = dma.vmem_to_hbm [thread:$0]  %s387, 128, %s3, [#allocation4]
    $region25: #{tpu_custom_call.1} parent=1 // pred_fallthru
      _
    // Predicated region
    $region26: #{tpu_custom_call.1} parent=1 // pred_check
      _
    $region27: #{tpu_custom_call.1} parent=1 // pred_check_branch
      %391 = sbr.rel (0) target = $region29
    $region28: #{tpu_custom_call.1} parent=1 // pred_region
      %392 = dma.done [#allocation4], 128
    $region29: #{tpu_custom_call.1} parent=1 // pred_fallthru
      _
    %393 = vsyncpa [#allocation3], 1
    %394 = vsyncpa [#allocation6], 1
    %395 = vsyncpa [#allocation4], 1

</llo_original>
